<compile_context>
chip_gen: v5e
topology: v5e:2x2
jax: 0.10.0
libtpu: 0.0.40
codegen_flags: <defaults>
</compile_context>

<pallas_src>
import functools

import jax
import jax.numpy as jnp
from jax import lax
from jax.experimental import pallas as pl
from jax.experimental.pallas import tpu as pltpu


def _series_decomp_kernel(x_ref, w_ref, res_ref, mean_ref, pad_ref, *,
                          kernel_size, pad, seq_len, chunk, precision):
    """x_ref:    (TR, L)              input row tile
       w_ref:    (cw + K - 1, cw)     0/1 banded window matrix (cw = min(128, L))
       res_ref:  (TR, L)              residual output (x - moving_mean)
       mean_ref: (TR, L)              moving_mean output
       pad_ref:  (TR, L + 2*pad)      VMEM scratch: replicate-padded tile
    """
    rows = x_ref.shape[0]

    # Replicate-edge padded copy of the tile, built once in VMEM scratch
    # (no padded copy of x ever touches HBM).
    pad_ref[:, pad:pad + seq_len] = x_ref[...]
    if pad > 0:
        pad_ref[:, 0:pad] = jnp.broadcast_to(x_ref[:, 0:1], (rows, pad))
        pad_ref[:, pad + seq_len:pad + seq_len + pad] = jnp.broadcast_to(
            x_ref[:, seq_len - 1:seq_len], (rows, pad))

    inv_k = jnp.float32(1.0 / kernel_size)

    # Banded-matmul moving average: each lane-aligned 128-wide output chunk is
    #   (padded[:, c0 : c0 + cw + K - 1] @ band01) * (1/K)
    # The 0/1 band matrix is exact in any dtype, so the window SUM is computed
    # on the MXU (f32 accumulate) and the 1/K scaling stays in f32 on the VPU.
    for c0 in range(0, seq_len, chunk):
        cw = min(chunk, seq_len - c0)
        seg = pad_ref[:, c0:c0 + cw + kernel_size - 1]          # aligned start
        wmat = w_ref[0:cw + kernel_size - 1, 0:cw]
        wsum = jnp.dot(seg, wmat, preferred_element_type=jnp.float32,
                       precision=precision)                      # (rows, cw) f32
        mean = wsum * inv_k
        xin = x_ref[:, c0:c0 + cw].astype(jnp.float32)
        mean_ref[:, c0:c0 + cw] = mean.astype(mean_ref.dtype)
        res_ref[:, c0:c0 + cw] = (xin - mean).astype(res_ref.dtype)


def _vmem_capacity_bytes():
    """Physical VMEM of the current generation (fallback: v7x's 64 MiB)."""
    try:
        info = pltpu.get_tpu_info()
        cap = getattr(info, "vmem_capacity_bytes", None)
        if cap:
            return int(cap)
    except Exception:
        pass
    return 64 * 1024 * 1024


def series_decomp(x, kernel_size, *, target_step_bytes=4 * 1024 * 1024):
    """JAX/Pallas equivalent of the PyTorch `series_decomp` forward.

    x: (B, C, L)  ->  (res, moving_mean), both (B, C, L).
    stride is 1 (as in the PyTorch module); kernel_size must be odd so the
    pooled length equals L.
    """
    assert kernel_size % 2 == 1, "series_decomp requires an odd kernel_size"
    B, C, L = x.shape
    pad = (kernel_size - 1) // 2
    rows = B * C
    itemsize = jnp.dtype(x.dtype).itemsize
    sub = {4: 8, 2: 16, 1: 32}.get(itemsize, 8)      # dtype-aware sublane multiple
    chunk = 128                                      # lane-aligned output chunk
    cw = min(chunk, L)

    # Generation-aware VMEM budget (v5e/v6e: 128 MiB physical, v7x: 64 MiB),
    # passed explicitly via vmem_limit_bytes instead of the 16/32 MiB defaults.
    vmem_cap = _vmem_capacity_bytes()
    vmem_limit = min(int(vmem_cap * 0.75), 100 * 1024 * 1024)
    budget = int(vmem_limit * 0.70)

    # Per-row VMEM: double-buffered input (2L) + two double-buffered outputs
    # (4L) + padded scratch (L+2p), plus headroom for Mosaic-internal f32
    # temporaries (dot result / mean / residual chunks).
    bytes_per_row = itemsize * (6 * L + (L + 2 * pad)) + 4 * (L + 6 * cw)
    w_bytes = 2 * (cw + kernel_size - 1) * cw * itemsize

    # Row tile: ~target_step_bytes of HBM traffic per grid step (in + 2 outs),
    # capped by the VMEM budget, rounded to the dtype's sublane multiple.
    if rows <= sub:
        tr = rows
    else:
        tr_target = max(sub, target_step_bytes // (3 * L * itemsize))
        tr_cap = max(sub, (budget - w_bytes) // bytes_per_row)
        tr = min(tr_target, tr_cap)
        if rows >= 2 * sub:
            # Keep >=2 grid steps so v7x can shard rows across its 2 TensorCores.
            half = max(sub, (pl.cdiv(rows, 2) // sub) * sub)
            tr = min(tr, half)
        tr = max(sub, (tr // sub) * sub)
        tr = min(tr, (rows // sub) * sub)
    grid = (pl.cdiv(rows, tr),)

    # 0/1 banded window matrix (exact in f32 and bf16).
    ii = jnp.arange(cw + kernel_size - 1, dtype=jnp.int32)[:, None]
    jj = jnp.arange(cw, dtype=jnp.int32)[None, :]
    band01 = ((ii >= jj) & (ii < jj + kernel_size)).astype(x.dtype)

    precision = lax.Precision.HIGHEST if x.dtype == jnp.float32 else None

    x2 = x.reshape(rows, L)
    kern = functools.partial(
        _series_decomp_kernel, kernel_size=kernel_size, pad=pad, seq_len=L,
        chunk=chunk, precision=precision)

    # TODO(synk): for L=96 the output lane dim (<128) still forces masked
    # partial stores; a rows-minor layout would fix it but only pays off if the
    # surrounding graph already provides that layout (an extra HBM transpose
    # would cost more than it saves for this memory-bound op).
    res, mean = pl.pallas_call(
        kern,
        out_shape=(
            jax.ShapeDtypeStruct((rows, L), x.dtype),
            jax.ShapeDtypeStruct((rows, L), x.dtype),
        ),
        grid=grid,
        in_specs=[
            pl.BlockSpec((tr, L), lambda g: (g, 0)),
            pl.BlockSpec((cw + kernel_size - 1, cw), lambda g: (0, 0)),
        ],
        out_specs=(
            pl.BlockSpec((tr, L), lambda g: (g, 0)),
            pl.BlockSpec((tr, L), lambda g: (g, 0)),
        ),
        scratch_shapes=[pltpu.VMEM((tr, L + 2 * pad), x.dtype)],
        compiler_params=pltpu.CompilerParams(
            dimension_semantics=("parallel",),
            vmem_limit_bytes=int(vmem_limit)),
    )(x2, band01)

    return res.reshape(B, C, L), mean.reshape(B, C, L)


if __name__ == "__main__":
    kernel_size = 25          # typical series_decomp window (odd, stride=1)
    B, C, L = 2, 4, 96        # (batch, channels, sequence length)

    key = jax.random.PRNGKey(0)
    x = jax.random.normal(key, (B, C, L), dtype=jnp.float32)

    res, mean = series_decomp(x, kernel_size)
    res, mean = jax.block_until_ready((res, mean))

    # Pure-JAX reference of the PyTorch semantics (replicate pad + AvgPool1d, stride 1).
    pad = (kernel_size - 1) // 2
    xp = jnp.concatenate(
        [jnp.repeat(x[:, :, 0:1], pad, axis=-1), x,
         jnp.repeat(x[:, :, -1:], pad, axis=-1)], axis=-1)
    windows = jnp.stack(
        [xp[:, :, t:t + kernel_size] for t in range(L)], axis=2)  # (B,C,L,K)
    mean_ref = windows.mean(axis=-1)
    res_ref = x - mean_ref

    assert mean.shape == mean_ref.shape, (mean.shape, mean_ref.shape)
    assert res.shape == res_ref.shape, (res.shape, res_ref.shape)
    assert jnp.allclose(mean, mean_ref, atol=1e-5, rtol=1e-5), \
        float(jnp.max(jnp.abs(mean - mean_ref)))
    assert jnp.allclose(res, res_ref, atol=1e-5, rtol=1e-5), \
        float(jnp.max(jnp.abs(res - res_ref)))
    print("KERNEL_OK")
</pallas_src>

<mosaic_0001>
module attributes {stable_mosaic.version = 11 : i64} {
  func.func @_series_decomp_kernel(%arg0: i32, %arg1: memref<8x96xf32, #tpu.memory_space<vmem>>, %arg2: memref<120x96xf32, #tpu.memory_space<vmem>>, %arg3: memref<8x96xf32, #tpu.memory_space<vmem>>, %arg4: memref<8x96xf32, #tpu.memory_space<vmem>>, %arg5: memref<8x120xf32, #tpu.memory_space<vmem>>) attributes {dimension_semantics = [#tpu.dimension_semantics<parallel>], iteration_bounds = array<i64: 1>, scalar_prefetch = 0 : i64, scratch_operands = 1 : i64, tpu.core_type = #tpu.core_type<tc>, window_params = [{transform_indices = @transform_0, window_bounds = array<i64: 8, 96>}, {pipeline_mode = #tpu.pipeline_mode<synchronous>, transform_indices = @transform_1, window_bounds = array<i64: 120, 96>}, {transform_indices = @transform_2, window_bounds = array<i64: 8, 96>}, {transform_indices = @transform_3, window_bounds = array<i64: 8, 96>}]} {
    %c0 = arith.constant 0 : index
    %c0_0 = arith.constant 0 : index
    %0 = vector.load %arg1[%c0, %c0_0] : memref<8x96xf32, #tpu.memory_space<vmem>>, vector<8x96xf32>
    %c0_1 = arith.constant 0 : index
    %c12 = arith.constant 12 : index
    %1 = vector.load %arg5[%c0_1, %c12] : memref<8x120xf32, #tpu.memory_space<vmem>>, vector<8x96xf32>
    tpu.vector_store %arg5[%c0_1, %c12], %0 {strides = array<i32>} : memref<8x120xf32, #tpu.memory_space<vmem>>, vector<8x96xf32>,
    %c0_2 = arith.constant 0 : index
    %c0_3 = arith.constant 0 : index
    %2 = vector.load %arg1[%c0_2, %c0_3] : memref<8x96xf32, #tpu.memory_space<vmem>>, vector<8x1xf32>
    %3 = vector.shape_cast %2 : vector<8x1xf32> to vector<8x1xf32>
    %4 = vector.broadcast %3 : vector<8x1xf32> to vector<8x12xf32>
    %c0_4 = arith.constant 0 : index
    %c0_5 = arith.constant 0 : index
    %5 = vector.load %arg5[%c0_4, %c0_5] : memref<8x120xf32, #tpu.memory_space<vmem>>, vector<8x12xf32>
    tpu.vector_store %arg5[%c0_4, %c0_5], %4 {strides = array<i32>} : memref<8x120xf32, #tpu.memory_space<vmem>>, vector<8x12xf32>,
    %c0_6 = arith.constant 0 : index
    %c95 = arith.constant 95 : index
    %6 = vector.load %arg1[%c0_6, %c95] : memref<8x96xf32, #tpu.memory_space<vmem>>, vector<8x1xf32>
    %7 = vector.shape_cast %6 : vector<8x1xf32> to vector<8x1xf32>
    %8 = vector.broadcast %7 : vector<8x1xf32> to vector<8x12xf32>
    %c0_7 = arith.constant 0 : index
    %c108 = arith.constant 108 : index
    %9 = vector.load %arg5[%c0_7, %c108] : memref<8x120xf32, #tpu.memory_space<vmem>>, vector<8x12xf32>
    tpu.vector_store %arg5[%c0_7, %c108], %8 {strides = array<i32>} : memref<8x120xf32, #tpu.memory_space<vmem>>, vector<8x12xf32>,
    %c0_8 = arith.constant 0 : index
    %c0_9 = arith.constant 0 : index
    %10 = vector.load %arg5[%c0_8, %c0_9] : memref<8x120xf32, #tpu.memory_space<vmem>>, vector<8x120xf32>
    %c0_10 = arith.constant 0 : index
    %c0_11 = arith.constant 0 : index
    %11 = vector.load %arg2[%c0_10, %c0_11] : memref<120x96xf32, #tpu.memory_space<vmem>>, vector<120x96xf32>
    %cst = arith.constant dense<0.000000e+00> : vector<8x96xf32>
    %12 = tpu.matmul %10, %11, %cst {dimension_numbers = #tpu.dot_dimension_numbers<[1], [0], [0], [1], [0, 0, 1, 1], [], []>, precision = #tpu.contract_precision<fp32>} : vector<8x120xf32>, vector<120x96xf32>, vector<8x96xf32> -> vector<8x96xf32>
    %cst_12 = arith.constant 4.000000e-02 : f32
    %13 = vector.broadcast %cst_12 : f32 to vector<8x96xf32>
    %14 = arith.mulf %12, %13 : vector<8x96xf32>
    %c0_13 = arith.constant 0 : index
    %c0_14 = arith.constant 0 : index
    %15 = vector.load %arg1[%c0_13, %c0_14] : memref<8x96xf32, #tpu.memory_space<vmem>>, vector<8x96xf32>
    %c0_15 = arith.constant 0 : index
    %c0_16 = arith.constant 0 : index
    %16 = vector.load %arg4[%c0_15, %c0_16] : memref<8x96xf32, #tpu.memory_space<vmem>>, vector<8x96xf32>
    tpu.vector_store %arg4[%c0_15, %c0_16], %14 {strides = array<i32>} : memref<8x96xf32, #tpu.memory_space<vmem>>, vector<8x96xf32>,
    %17 = arith.subf %15, %14 : vector<8x96xf32>
    %c0_17 = arith.constant 0 : index
    %c0_18 = arith.constant 0 : index
    %18 = vector.load %arg3[%c0_17, %c0_18] : memref<8x96xf32, #tpu.memory_space<vmem>>, vector<8x96xf32>
    tpu.vector_store %arg3[%c0_17, %c0_18], %17 {strides = array<i32>} : memref<8x96xf32, #tpu.memory_space<vmem>>, vector<8x96xf32>,
    return
  }
  func.func @transform_0(%arg0: i32) -> (i32, i32) {
    %c0_i32 = arith.constant 0 : i32
    %c0_i32_0 = arith.constant 0 : i32
    return %arg0, %c0_i32 : i32, i32
  }
  func.func @transform_1(%arg0: i32) -> (i32, i32) {
    %c0_i32 = arith.constant 0 : i32
    %c0_i32_0 = arith.constant 0 : i32
    %c0_i32_1 = arith.constant 0 : i32
    return %c0_i32, %c0_i32_0 : i32, i32
  }
  func.func @transform_2(%arg0: i32) -> (i32, i32) {
    %c0_i32 = arith.constant 0 : i32
    %c0_i32_0 = arith.constant 0 : i32
    return %arg0, %c0_i32 : i32, i32
  }
  func.func @transform_3(%arg0: i32) -> (i32, i32) {
    %c0_i32 = arith.constant 0 : i32
    %c0_i32_0 = arith.constant 0 : i32
    return %arg0, %c0_i32 : i32, i32
  }
}

</mosaic_0001>

<llo_original>
// kernel: tpu_custom_call.1
$region0: #{tpu_custom_call.1}
  #allocation0 [shape = 'u32[]', space=smem, size = 0x4, offset = 0x4, fixed_abs, tag = 'smem constant byte address 0x4 - core index']
  #allocation1 [shape = 'u32[72,128]{1,0:T(1,128)}', space=vmem, size = 0x9000, scoped, tag = 'internal scratch']
  #allocation2 [shape = 'f32[8,120]{1,0:T(8,128)}', space=vmem, size = 0x1000, scoped, tag = 'scratch operand']
  %s0 = inlined_call_operand.vmem [shape: f32[8,96], index: 0, kind: input, shape index: {}]
  %s1 = inlined_call_operand.vmem [shape: f32[120,96], index: 1, kind: input, shape index: {}]
  %s2 = inlined_call_operand.hbm [shape: f32[8,96], index: 2, kind: output, shape index: {0}]
  %s3 = inlined_call_operand.hbm [shape: f32[8,96], index: 3, kind: output, shape index: {1}]
  %4 = xla_tuple %s2, %s3
  %s5 = sld [smem:[#allocation0]]
  $region26: #{tpu_custom_call.1} parent=0
    _
  %s7 = ssub.s32 1, %s5
  %s8 = scalar_select 0, %s7, %s5
  $region1: #{tpu_custom_call.1} parent=0
    #allocation3 [shape = 'u8[4096]{0}', space=vmem, size = 0x1000, scoped, tag = 'output window, operand 0, single buffered']
    #allocation4 [shape = 's32[1]{0}', space=sflag, size = 0x4, scoped, tag = 'scoped memory for tpu_custom_call.1']
    #allocation5 [shape = 'u8[4096]{0}', space=vmem, size = 0x1000, scoped, tag = 'output window, operand 1, single buffered']
    #allocation6 [shape = 's32[1]{0}', space=sflag, size = 0x4, scoped, tag = 'scoped memory for tpu_custom_call.1']
    %9 = vsyncpa [#allocation4], 0
    %10 = vsyncpa [#allocation6], 0
    // Predicated region
    $region2: #{tpu_custom_call.1} parent=1 // pred_check
      _
    $region3: #{tpu_custom_call.1} parent=1 // pred_check_branch
      %12 = sbr.rel (0) target = $region5
    $region4: #{tpu_custom_call.1} parent=1 // pred_region
      _
    $region5: #{tpu_custom_call.1} parent=1 // pred_fallthru
      _
    // Predicated region
    $region6: #{tpu_custom_call.1} parent=1 // pred_check
      _
    $region7: #{tpu_custom_call.1} parent=1 // pred_check_branch
      %14 = sbr.rel (0) target = $region9
    $region8: #{tpu_custom_call.1} parent=1 // pred_region
      _
    $region9: #{tpu_custom_call.1} parent=1 // pred_fallthru
      _
    %v15 = vld [vmem:[%s0] sm:$0xff]
    %17 = vrot.lane.b32.xlu0 %v15, 12
    %v18 = vpop.permute.xlu0 %17
    %vm20 = vcmask 883808
    %21 = vst.msk [vmem:[#allocation2] sm:$0xff] %vm20, %v18
    %v22 = vld [vmem:[%s0] sm:$0xff]
    %24 = vset.pattern.permute.xlu0 0
    %25 = vperm.xlu0 %24, %v22
    %v26 = vpop.permute.xlu0 %25
    %vm28 = vcmask 97280
    %29 = vst.msk [vmem:[#allocation2] sm:$0xff] %vm28, %v26
    %v30 = vld [vmem:[%s0] sm:$0xff]
    %32 = vset.pattern.permute.xlu0 95
    %33 = vperm.xlu0 %32, %v30
    %v34 = vpop.permute.xlu0 %33
    %vm36 = vcmask 982880
    %37 = vst.msk [vmem:[#allocation2] sm:$0xff] %vm36, %v34
    %v38 = vld [vmem:[#allocation2] sm:$0xff]
    %v39 = vld [vmem:[%s1] sm:$0xff]
    %v40 = vld [vmem:[%s1 + $0x8] sm:$0xff]
    %v41 = vld [vmem:[%s1 + $0x10] sm:$0xff]
    %v42 = vld [vmem:[%s1 + $0x18] sm:$0xff]
    %v43 = vld [vmem:[%s1 + $0x20] sm:$0xff]
    %v44 = vld [vmem:[%s1 + $0x28] sm:$0xff]
    %v45 = vld [vmem:[%s1 + $0x30] sm:$0xff]
    %v46 = vld [vmem:[%s1 + $0x38] sm:$0xff]
    %v47 = vld [vmem:[%s1 + $0x40] sm:$0xff]
    %v48 = vld [vmem:[%s1 + $0x48] sm:$0xff]
    %v49 = vld [vmem:[%s1 + $0x50] sm:$0xff]
    %v50 = vld [vmem:[%s1 + $0x58] sm:$0xff]
    %v51 = vld [vmem:[%s1 + $0x60] sm:$0xff]
    %v52 = vld [vmem:[%s1 + $0x68] sm:$0xff]
    %v53 = vld [vmem:[%s1 + $0x70] sm:$0xff]
    %vm54 = vcmask 982016
    %v56 = vsel %vm54, %v38, 0
    %58 = vmatpush.msra.mxu0 0.0
    %v59 = vand.u32 %v53, 4294901760
    %60 = vmatpush.msra.mxu0 %v59
    %v61 = vand.u32 %v52, 4294901760
    %62 = vmatpush.msra.mxu0 %v61
    %v63 = vand.u32 %v51, 4294901760
    %64 = vmatpush.msra.mxu0 %v63
    %v65 = vand.u32 %v50, 4294901760
    %66 = vmatpush.msra.mxu0 %v65
    %v67 = vand.u32 %v49, 4294901760
    %68 = vmatpush.msra.mxu0 %v67
    %v69 = vand.u32 %v48, 4294901760
    %70 = vmatpush.msra.mxu0 %v69
    %v71 = vand.u32 %v47, 4294901760
    %72 = vmatpush.msra.mxu0 %v71
    %v73 = vand.u32 %v46, 4294901760
    %74 = vmatpush.msra.mxu0 %v73
    %v75 = vand.u32 %v45, 4294901760
    %76 = vmatpush.msra.mxu0 %v75
    %v77 = vand.u32 %v44, 4294901760
    %78 = vmatpush.msra.mxu0 %v77
    %v79 = vand.u32 %v43, 4294901760
    %80 = vmatpush.msra.mxu0 %v79
    %v81 = vand.u32 %v42, 4294901760
    %82 = vmatpush.msra.mxu0 %v81
    %v83 = vand.u32 %v41, 4294901760
    %84 = vmatpush.msra.mxu0 %v83
    %v85 = vand.u32 %v40, 4294901760
    %86 = vmatpush.msra.mxu0 %v85
    %v87 = vand.u32 %v39, 4294901760
    %88 = vmatpush.msra.mxu0 %v87
    %v89 = vand.u32 %v56, 4294901760
    %v90 = vsub.f32 %v56, %v89
    %v91 = vand.u32 %v90, 4294901760
    %v92 = vsub.f32 %v90, %v91
    %v93 = vand.u32 %v92, 4294901760
    %94 = vmatmul.f32.gmra.mxu0 %v93
    %v95 = vpop.f32.mrf.mxu0
    %v96 = vadd.f32 0.0, %v95
    %97 = vdwg.mxu0
    %98 = vmatpush.msra.mxu0 0.0
    %v99 = vand.u32 %v53, 4294901760
    %v100 = vsub.f32 %v53, %v99
    %v101 = vand.u32 %v100, 4294901760
    %v102 = vsub.f32 %v100, %v101
    %v103 = vand.u32 %v102, 4294901760
    %104 = vmatpush.msra.mxu0 %v103
    %v105 = vand.u32 %v52, 4294901760
    %v106 = vsub.f32 %v52, %v105
    %v107 = vand.u32 %v106, 4294901760
    %v108 = vsub.f32 %v106, %v107
    %v109 = vand.u32 %v108, 4294901760
    %110 = vmatpush.msra.mxu0 %v109
    %v111 = vand.u32 %v51, 4294901760
    %v112 = vsub.f32 %v51, %v111
    %v113 = vand.u32 %v112, 4294901760
    %v114 = vsub.f32 %v112, %v113
    %v115 = vand.u32 %v114, 4294901760
    %116 = vmatpush.msra.mxu0 %v115
    %v117 = vand.u32 %v50, 4294901760
    %v118 = vsub.f32 %v50, %v117
    %v119 = vand.u32 %v118, 4294901760
    %v120 = vsub.f32 %v118, %v119
    %v121 = vand.u32 %v120, 4294901760
    %122 = vmatpush.msra.mxu0 %v121
    %v123 = vand.u32 %v49, 4294901760
    %v124 = vsub.f32 %v49, %v123
    %v125 = vand.u32 %v124, 4294901760
    %v126 = vsub.f32 %v124, %v125
    %v127 = vand.u32 %v126, 4294901760
    %128 = vmatpush.msra.mxu0 %v127
    %v129 = vand.u32 %v48, 4294901760
    %v130 = vsub.f32 %v48, %v129
    %v131 = vand.u32 %v130, 4294901760
    %v132 = vsub.f32 %v130, %v131
    %v133 = vand.u32 %v132, 4294901760
    %134 = vmatpush.msra.mxu0 %v133
    %v135 = vand.u32 %v47, 4294901760
    %v136 = vsub.f32 %v47, %v135
    %v137 = vand.u32 %v136, 4294901760
    %v138 = vsub.f32 %v136, %v137
    %v139 = vand.u32 %v138, 4294901760
    %140 = vmatpush.msra.mxu0 %v139
    %v141 = vand.u32 %v46, 4294901760
    %v142 = vsub.f32 %v46, %v141
    %v143 = vand.u32 %v142, 4294901760
    %v144 = vsub.f32 %v142, %v143
    %v145 = vand.u32 %v144, 4294901760
    %146 = vmatpush.msra.mxu0 %v145
    %v147 = vand.u32 %v45, 4294901760
    %v148 = vsub.f32 %v45, %v147
    %v149 = vand.u32 %v148, 4294901760
    %v150 = vsub.f32 %v148, %v149
    %v151 = vand.u32 %v150, 4294901760
    %152 = vmatpush.msra.mxu0 %v151
    %v153 = vand.u32 %v44, 4294901760
    %v154 = vsub.f32 %v44, %v153
    %v155 = vand.u32 %v154, 4294901760
    %v156 = vsub.f32 %v154, %v155
    %v157 = vand.u32 %v156, 4294901760
    %158 = vmatpush.msra.mxu0 %v157
    %v159 = vand.u32 %v43, 4294901760
    %v160 = vsub.f32 %v43, %v159
    %v161 = vand.u32 %v160, 4294901760
    %v162 = vsub.f32 %v160, %v161
    %v163 = vand.u32 %v162, 4294901760
    %164 = vmatpush.msra.mxu0 %v163
    %v165 = vand.u32 %v42, 4294901760
    %v166 = vsub.f32 %v42, %v165
    %v167 = vand.u32 %v166, 4294901760
    %v168 = vsub.f32 %v166, %v167
    %v169 = vand.u32 %v168, 4294901760
    %170 = vmatpush.msra.mxu0 %v169
    %v171 = vand.u32 %v41, 4294901760
    %v172 = vsub.f32 %v41, %v171
    %v173 = vand.u32 %v172, 4294901760
    %v174 = vsub.f32 %v172, %v173
    %v175 = vand.u32 %v174, 4294901760
    %176 = vmatpush.msra.mxu0 %v175
    %v177 = vand.u32 %v40, 4294901760
    %v178 = vsub.f32 %v40, %v177
    %v179 = vand.u32 %v178, 4294901760
    %v180 = vsub.f32 %v178, %v179
    %v181 = vand.u32 %v180, 4294901760
    %182 = vmatpush.msra.mxu0 %v181
    %v183 = vand.u32 %v39, 4294901760
    %v184 = vsub.f32 %v39, %v183
    %v185 = vand.u32 %v184, 4294901760
    %v186 = vsub.f32 %v184, %v185
    %v187 = vand.u32 %v186, 4294901760
    %188 = vmatpush.msra.mxu0 %v187
    %v189 = vand.u32 %v56, 4294901760
    %190 = vmatmul.f32.gmra.mxu0 %v189
    %v191 = vpop.f32.mrf.mxu0
    %v192 = vadd.f32 %v96, %v191
    %193 = vdwg.mxu0
    %194 = vmatpush.msra.mxu0 0.0
    %v195 = vand.u32 %v53, 4294901760
    %v196 = vsub.f32 %v53, %v195
    %197 = vmatpush.msra.mxu0 %v196
    %v198 = vand.u32 %v52, 4294901760
    %v199 = vsub.f32 %v52, %v198
    %200 = vmatpush.msra.mxu0 %v199
    %v201 = vand.u32 %v51, 4294901760
    %v202 = vsub.f32 %v51, %v201
    %203 = vmatpush.msra.mxu0 %v202
    %v204 = vand.u32 %v50, 4294901760
    %v205 = vsub.f32 %v50, %v204
    %206 = vmatpush.msra.mxu0 %v205
    %v207 = vand.u32 %v49, 4294901760
    %v208 = vsub.f32 %v49, %v207
    %209 = vmatpush.msra.mxu0 %v208
    %v210 = vand.u32 %v48, 4294901760
    %v211 = vsub.f32 %v48, %v210
    %212 = vmatpush.msra.mxu0 %v211
    %v213 = vand.u32 %v47, 4294901760
    %v214 = vsub.f32 %v47, %v213
    %215 = vmatpush.msra.mxu0 %v214
    %v216 = vand.u32 %v46, 4294901760
    %v217 = vsub.f32 %v46, %v216
    %218 = vmatpush.msra.mxu0 %v217
    %v219 = vand.u32 %v45, 4294901760
    %v220 = vsub.f32 %v45, %v219
    %221 = vmatpush.msra.mxu0 %v220
    %v222 = vand.u32 %v44, 4294901760
    %v223 = vsub.f32 %v44, %v222
    %224 = vmatpush.msra.mxu0 %v223
    %v225 = vand.u32 %v43, 4294901760
    %v226 = vsub.f32 %v43, %v225
    %227 = vmatpush.msra.mxu0 %v226
    %v228 = vand.u32 %v42, 4294901760
    %v229 = vsub.f32 %v42, %v228
    %230 = vmatpush.msra.mxu0 %v229
    %v231 = vand.u32 %v41, 4294901760
    %v232 = vsub.f32 %v41, %v231
    %233 = vmatpush.msra.mxu0 %v232
    %v234 = vand.u32 %v40, 4294901760
    %v235 = vsub.f32 %v40, %v234
    %236 = vmatpush.msra.mxu0 %v235
    %v237 = vand.u32 %v39, 4294901760
    %v238 = vsub.f32 %v39, %v237
    %239 = vmatpush.msra.mxu0 %v238
    %v240 = vand.u32 %v56, 4294901760
    %v241 = vsub.f32 %v56, %v240
    %242 = vmatmul.f32.gmra.mxu0 %v241
    %v243 = vpop.f32.mrf.mxu0
    %v244 = vadd.f32 %v192, %v243
    %245 = vdwg.mxu0
    %246 = vmatpush.msra.mxu0 0.0
    %v247 = vand.u32 %v53, 4294901760
    %248 = vmatpush.msra.mxu0 %v247
    %v249 = vand.u32 %v52, 4294901760
    %250 = vmatpush.msra.mxu0 %v249
    %v251 = vand.u32 %v51, 4294901760
    %252 = vmatpush.msra.mxu0 %v251
    %v253 = vand.u32 %v50, 4294901760
    %254 = vmatpush.msra.mxu0 %v253
    %v255 = vand.u32 %v49, 4294901760
    %256 = vmatpush.msra.mxu0 %v255
    %v257 = vand.u32 %v48, 4294901760
    %258 = vmatpush.msra.mxu0 %v257
    %v259 = vand.u32 %v47, 4294901760
    %260 = vmatpush.msra.mxu0 %v259
    %v261 = vand.u32 %v46, 4294901760
    %262 = vmatpush.msra.mxu0 %v261
    %v263 = vand.u32 %v45, 4294901760
    %264 = vmatpush.msra.mxu0 %v263
    %v265 = vand.u32 %v44, 4294901760
    %266 = vmatpush.msra.mxu0 %v265
    %v267 = vand.u32 %v43, 4294901760
    %268 = vmatpush.msra.mxu0 %v267
    %v269 = vand.u32 %v42, 4294901760
    %270 = vmatpush.msra.mxu0 %v269
    %v271 = vand.u32 %v41, 4294901760
    %272 = vmatpush.msra.mxu0 %v271
    %v273 = vand.u32 %v40, 4294901760
    %274 = vmatpush.msra.mxu0 %v273
    %v275 = vand.u32 %v39, 4294901760
    %276 = vmatpush.msra.mxu0 %v275
    %v277 = vand.u32 %v56, 4294901760
    %v278 = vsub.f32 %v56, %v277
    %v279 = vand.u32 %v278, 4294901760
    %280 = vmatmul.f32.gmra.mxu0 %v279
    %v281 = vpop.f32.mrf.mxu0
    %v282 = vadd.f32 %v244, %v281
    %283 = vdwg.mxu0
    %284 = vmatpush.msra.mxu0 0.0
    %v285 = vand.u32 %v53, 4294901760
    %v286 = vsub.f32 %v53, %v285
    %v287 = vand.u32 %v286, 4294901760
    %288 = vmatpush.msra.mxu0 %v287
    %v289 = vand.u32 %v52, 4294901760
    %v290 = vsub.f32 %v52, %v289
    %v291 = vand.u32 %v290, 4294901760
    %292 = vmatpush.msra.mxu0 %v291
    %v293 = vand.u32 %v51, 4294901760
    %v294 = vsub.f32 %v51, %v293
    %v295 = vand.u32 %v294, 4294901760
    %296 = vmatpush.msra.mxu0 %v295
    %v297 = vand.u32 %v50, 4294901760
    %v298 = vsub.f32 %v50, %v297
    %v299 = vand.u32 %v298, 4294901760
    %300 = vmatpush.msra.mxu0 %v299
    %v301 = vand.u32 %v49, 4294901760
    %v302 = vsub.f32 %v49, %v301
    %v303 = vand.u32 %v302, 4294901760
    %304 = vmatpush.msra.mxu0 %v303
    %v305 = vand.u32 %v48, 4294901760
    %v306 = vsub.f32 %v48, %v305
    %v307 = vand.u32 %v306, 4294901760
    %308 = vmatpush.msra.mxu0 %v307
    %v309 = vand.u32 %v47, 4294901760
    %v310 = vsub.f32 %v47, %v309
    %v311 = vand.u32 %v310, 4294901760
    %312 = vmatpush.msra.mxu0 %v311
    %v313 = vand.u32 %v46, 4294901760
    %v314 = vsub.f32 %v46, %v313
    %v315 = vand.u32 %v314, 4294901760
    %316 = vmatpush.msra.mxu0 %v315
    %v317 = vand.u32 %v45, 4294901760
    %v318 = vsub.f32 %v45, %v317
    %v319 = vand.u32 %v318, 4294901760
    %320 = vmatpush.msra.mxu0 %v319
    %v321 = vand.u32 %v44, 4294901760
    %v322 = vsub.f32 %v44, %v321
    %v323 = vand.u32 %v322, 4294901760
    %324 = vmatpush.msra.mxu0 %v323
    %v325 = vand.u32 %v43, 4294901760
    %v326 = vsub.f32 %v43, %v325
    %v327 = vand.u32 %v326, 4294901760
    %328 = vmatpush.msra.mxu0 %v327
    %v329 = vand.u32 %v42, 4294901760
    %v330 = vsub.f32 %v42, %v329
    %v331 = vand.u32 %v330, 4294901760
    %332 = vmatpush.msra.mxu0 %v331
    %v333 = vand.u32 %v41, 4294901760
    %v334 = vsub.f32 %v41, %v333
    %v335 = vand.u32 %v334, 4294901760
    %336 = vmatpush.msra.mxu0 %v335
    %v337 = vand.u32 %v40, 4294901760
    %v338 = vsub.f32 %v40, %v337
    %v339 = vand.u32 %v338, 4294901760
    %340 = vmatpush.msra.mxu0 %v339
    %v341 = vand.u32 %v39, 4294901760
    %v342 = vsub.f32 %v39, %v341
    %v343 = vand.u32 %v342, 4294901760
    %344 = vmatpush.msra.mxu0 %v343
    %v345 = vand.u32 %v56, 4294901760
    %346 = vmatmul.f32.gmra.mxu0 %v345
    %v347 = vpop.f32.mrf.mxu0
    %v348 = vadd.f32 %v282, %v347
    %349 = vdwg.mxu0
    %350 = vmatpush.msra.mxu0 0.0
    %v351 = vand.u32 %v53, 4294901760
    %352 = vmatpush.msra.mxu0 %v351
    %v353 = vand.u32 %v52, 4294901760
    %354 = vmatpush.msra.mxu0 %v353
    %v355 = vand.u32 %v51, 4294901760
    %356 = vmatpush.msra.mxu0 %v355
    %v357 = vand.u32 %v50, 4294901760
    %358 = vmatpush.msra.mxu0 %v357
    %v359 = vand.u32 %v49, 4294901760
    %360 = vmatpush.msra.mxu0 %v359
    %v361 = vand.u32 %v48, 4294901760
    %362 = vmatpush.msra.mxu0 %v361
    %v363 = vand.u32 %v47, 4294901760
    %364 = vmatpush.msra.mxu0 %v363
    %v365 = vand.u32 %v46, 4294901760
    %366 = vmatpush.msra.mxu0 %v365
    %v367 = vand.u32 %v45, 4294901760
    %368 = vmatpush.msra.mxu0 %v367
    %v369 = vand.u32 %v44, 4294901760
    %370 = vmatpush.msra.mxu0 %v369
    %v371 = vand.u32 %v43, 4294901760
    %372 = vmatpush.msra.mxu0 %v371
    %v373 = vand.u32 %v42, 4294901760
    %374 = vmatpush.msra.mxu0 %v373
    %v375 = vand.u32 %v41, 4294901760
    %376 = vmatpush.msra.mxu0 %v375
    %v377 = vand.u32 %v40, 4294901760
    %378 = vmatpush.msra.mxu0 %v377
    %v379 = vand.u32 %v39, 4294901760
    %380 = vmatpush.msra.mxu0 %v379
    %v381 = vand.u32 %v56, 4294901760
    %382 = vmatmul.f32.gmra.mxu0 %v381
    %v383 = vpop.f32.mrf.mxu0
    %v384 = vadd.f32 %v348, %v383
    %385 = vdwg.mxu0
    %v386 = vmul.f32 %v384, 0.04
    %v387 = vld [vmem:[%s0] sm:$0xff]
    %vm388 = vcmask 785408
    %389 = vst.msk [vmem:[#allocation5] sm:$0xff] %vm388, %v386
    %v390 = vsub.f32 %v387, %v386
    %391 = vst.msk [vmem:[#allocation3] sm:$0xff] %vm388, %v390
    // Predicated region
    $region10: #{tpu_custom_call.1} parent=1 // pred_check
      _
    $region11: #{tpu_custom_call.1} parent=1 // pred_check_branch
      %393 = sbr.rel (0) target = $region13
    $region12: #{tpu_custom_call.1} parent=1 // pred_region
      %395 = vsyncadd [#allocation4], 0
      %s397 = sshll.u32 [#allocation3], 4
      %s398 = int_to_ptr.vmem [resolvable:$true] %s397
      %s399 = sshll.u32 %s2, 4
      %s400 = int_to_ptr.hbm [resolvable:$true] %s399
      %402 = dma.vmem_to_hbm [thread:$0]  %s398, 128, %s400, [#allocation4]
    $region13: #{tpu_custom_call.1} parent=1 // pred_fallthru
      _
    // Predicated region
    $region14: #{tpu_custom_call.1} parent=1 // pred_check
      _
    $region15: #{tpu_custom_call.1} parent=1 // pred_check_branch
      %404 = sbr.rel (0) target = $region17
    $region16: #{tpu_custom_call.1} parent=1 // pred_region
      %406 = vsyncadd [#allocation6], 0
      %s408 = sshll.u32 [#allocation5], 4
      %s409 = int_to_ptr.vmem [resolvable:$true] %s408
      %s410 = sshll.u32 %s3, 4
      %s411 = int_to_ptr.hbm [resolvable:$true] %s410
      %413 = dma.vmem_to_hbm [thread:$0]  %s409, 128, %s411, [#allocation6]
    $region17: #{tpu_custom_call.1} parent=1 // pred_fallthru
      _
    // Predicated region
    $region18: #{tpu_custom_call.1} parent=1 // pred_check
      _
    $region19: #{tpu_custom_call.1} parent=1 // pred_check_branch
      %415 = sbr.rel (0) target = $region21
    $region20: #{tpu_custom_call.1} parent=1 // pred_region
      %417 = dma.done [#allocation4], 128
    $region21: #{tpu_custom_call.1} parent=1 // pred_fallthru
      _
    // Predicated region
    $region22: #{tpu_custom_call.1} parent=1 // pred_check
      _
    $region23: #{tpu_custom_call.1} parent=1 // pred_check_branch
      %419 = sbr.rel (0) target = $region25
    $region24: #{tpu_custom_call.1} parent=1 // pred_region
      %421 = dma.done [#allocation6], 128
    $region25: #{tpu_custom_call.1} parent=1 // pred_fallthru
      _
    %422 = vsyncpa [#allocation4], 1
    %423 = vsyncpa [#allocation6], 1

</llo_original>
